<compile_context>
chip_gen: v7x
topology: tpu7x:2x2x1
jax: 0.10.0
libtpu: 0.0.40
codegen_flags: <defaults>
</compile_context>

<pallas_src>
import functools

import jax
import jax.numpy as jnp
from jax.experimental import pallas as pl
from jax.experimental.pallas import tpu as pltpu


# ----------------------------- Pallas kernel ------------------------------- #

def fused_gcn_stack_kernel(a_ref, xw0_ref, wT_ref, b_ref,      # inputs
                           states_ref, o_ref,                  # outputs
                           xw_scr, *a_scratch,                 # VMEM scratch
                           tm, n_pad, num_layers, apply_l2norm, a_resident):
    """Grid = (num_layers, num_row_tiles); layer axis outermost (sequential)."""
    l = pl.program_id(0)
    i = pl.program_id(1)
    first_step = jnp.logical_and(l == 0, i == 0)

    # ---- one-time setup at the very first grid step ------------------------
    if a_resident:
        a_vmem, a_sem = a_scratch

        @pl.when(first_step)
        def _():
            # A_hat is read from HBM exactly once and stays resident
            # (single-buffered) in VMEM across all layers and row tiles.
            cp = pltpu.make_async_copy(a_ref, a_vmem, a_sem)
            cp.start()
            cp.wait()

    @pl.when(first_step)
    def _():
        # Seed ping-pong slot 0 with layer 0's XW = X0 @ W0^T (from the wrapper).
        xw_scr[pl.ds(0, n_pad), :] = xw0_ref[...]

    # ---- per (layer, row-tile) work -----------------------------------------
    row = pl.multiple_of(i * tm, tm)
    cur_base = pl.multiple_of((l % 2) * n_pad, tm)        # XW consumed by layer l
    nxt_base = pl.multiple_of(((l + 1) % 2) * n_pad, tm)  # XW produced for l + 1

    if a_resident:
        a_tile = a_vmem[pl.ds(row, tm), :]                # (tm, n_pad) bf16
    else:
        a_tile = a_ref[...]                               # (tm, n_pad) bf16

    xw_cur = xw_scr[pl.ds(cur_base, n_pad), :]            # (n_pad, d_pad) bf16

    # Aggregation: A_hat[tile] @ XW  (bf16 x bf16 -> f32 MXU accumulation).
    agg = jnp.dot(a_tile, xw_cur, preferred_element_type=jnp.float32)
    h = jnp.maximum(agg + b_ref[0], 0.0)                  # bias + ReLU in f32
    # TODO(synk): training-mode F.dropout (stateful RNG mask) not implemented;
    # eval-mode dropout is the identity, which is what we reproduce here.

    # node_states[l] = x  (per-layer activations, public f32 output).
    states_ref[0] = h.astype(states_ref.dtype)

    # Incrementally build the NEXT layer's XW for this row tile (bf16 operands,
    # f32 accumulation) — removes the per-layer serialization bubble entirely.
    @pl.when(l < num_layers - 1)
    def _():
        nxt = jnp.dot(h.astype(jnp.bfloat16), wT_ref[0],
                      preferred_element_type=jnp.float32)
        xw_scr[pl.ds(nxt_base + row, tm), :] = nxt.astype(xw_scr.dtype)

    # Final node_feature is emitted only by the last layer; earlier writes would
    # be dead stores that the last layer fully overwrites anyway.
    @pl.when(l == num_layers - 1)
    def _():
        if apply_l2norm:
            ssq = jnp.sum(h * h, axis=-1, keepdims=True)
            # 1/sqrt(max(ssq, eps^2)) == 1/max(||x||, eps)  (eps = 1e-12), on EUP.
            inv = jax.lax.rsqrt(jnp.maximum(ssq, 1e-24))
            o_ref[...] = (h * inv).astype(o_ref.dtype)
        else:
            o_ref[...] = h.astype(o_ref.dtype)


# ------------------------------ glue / wrappers ----------------------------- #

def _round_up(x, m):
    return ((x + m - 1) // m) * m


def _vmem_capacity_bytes():
    """Per-TensorCore VMEM capacity; conservative fallback if the query fails."""
    try:
        info = pltpu.get_tpu_info()
        for attr in ("vmem_capacity_bytes", "vmem_size_bytes", "vmem_bytes"):
            cap = getattr(info, attr, None)
            if cap:
                return int(cap)
    except Exception:
        pass
    return 64 * 1024 * 1024   # v7x per-TC size == safe lower bound everywhere


def build_gcn_norm_adj(edge_index, num_nodes):
    """Dense A_hat = D^{-1/2} (A + I) D^{-1/2}, matching PyG gcn_norm (f32).

    edge_index: [2, E] with row 0 = source, row 1 = destination.
    Message passing aggregates sources into destinations: A[dst, src] += 1.
    """
    src, dst = edge_index[0], edge_index[1]
    A = jnp.zeros((num_nodes, num_nodes), jnp.float32)
    A = A.at[dst, src].add(1.0)                       # scatter-add (PyG parity)
    A = A + jnp.eye(num_nodes, dtype=jnp.float32)     # add_self_loops=True
    deg = jnp.sum(A, axis=1)
    d_inv_sqrt = jnp.where(deg > 0, 1.0 / jnp.sqrt(deg), 0.0)
    return (d_inv_sqrt[:, None] * A) * d_inv_sqrt[None, :]


def gnn_stack_stage(x, edge_index, weights, biases, l2norm=True):
    """Forward pass of GNNStackStage as a single fused Pallas kernel.

    Returns (node_feature, node_states) where node_states[i] is the output of
    layer i (pre-l2norm), mirroring batch.node_states[layer_id] = x.clone().
    """
    n, d = x.shape
    num_layers = len(weights)
    assert len(biases) == num_layers and num_layers >= 1

    # --- padded / packed shapes: lane-dense feature dim, 128-aligned rows ----
    d_pad = _round_up(d, 128)
    tm = min(512, _round_up(n, 128))     # moderate row tile keeps vreg pressure low
    n_pad = _round_up(n, tm)             # tm is a multiple of 128, so n_pad is too
    n_tiles = n_pad // tm

    # --- generation-aware VMEM budget / A_hat residency decision -------------
    vmem_cap = _vmem_capacity_bytes()
    common_bytes = (
        2 * n_pad * d_pad * 2          # resident XW0 input (bf16, double-buffered)
        + 2 * n_pad * d_pad * 2        # XW ping-pong scratch (bf16)
        + 2 * d_pad * d_pad * 2        # per-layer W^T block (bf16, double-buffered)
        + 2 * 8 * d_pad * 4            # per-layer bias block
        + 4 * tm * d_pad * 4           # two f32 outputs, double-buffered
        + 8 * tm * d_pad * 4           # margin for compiler temporaries (agg/h/casts)
    )
    resident_a_bytes = n_pad * n_pad * 2        # single-buffered bf16 A_hat scratch
    streamed_a_bytes = 2 * tm * n_pad * 2       # double-buffered bf16 row tiles
    a_resident = (common_bytes + resident_a_bytes) <= int(0.70 * vmem_cap)
    need_bytes = common_bytes + (resident_a_bytes if a_resident else streamed_a_bytes)
    # TODO(synk): for graphs where even streamed (tm, n_pad) tiles overflow the
    # v7x 64 MiB budget, add a third (K) grid axis over A_hat columns with an
    # f32 accumulator scratch.
    vmem_limit = min(max(int(1.4 * need_bytes) + (4 << 20), 32 << 20),
                     int(0.82 * vmem_cap))

    # --- operand packing ------------------------------------------------------
    a_hat = build_gcn_norm_adj(edge_index, n)                      # f32 precision
    a_hat = jnp.pad(a_hat, ((0, n_pad - n), (0, n_pad - n))).astype(jnp.bfloat16)

    x0 = jnp.pad(x.astype(jnp.float32), ((0, n_pad - n), (0, d_pad - d)))
    wT = jnp.stack([jnp.pad(jnp.asarray(w, jnp.float32).T,
                            ((0, d_pad - d), (0, d_pad - d))) for w in weights])
    b = jnp.stack([jnp.pad(jnp.asarray(bb, jnp.float32).reshape(1, -1),
                           ((0, 0), (0, d_pad - d))) for bb in biases])

    # Layer 0's XW seed computed once in the wrapper (f32 matmul, stored bf16).
    xw0 = jnp.dot(x0, wT[0], preferred_element_type=jnp.float32).astype(jnp.bfloat16)
    wT = wT.astype(jnp.bfloat16)      # kernel only needs W_{l+1}^T as bf16 operands

    # --- specs ----------------------------------------------------------------
    if a_resident:
        a_spec = pl.BlockSpec(memory_space=pl.ANY)   # raw HBM ref; manual DMA once
    else:
        a_spec = pl.BlockSpec((tm, n_pad), lambda l, i: (i, 0))

    grid_spec = pltpu.PrefetchScalarGridSpec(
        num_scalar_prefetch=0,
        grid=(num_layers, n_tiles),
        in_specs=[
            a_spec,
            # XW0 seed, resident (constant block index; consumed once at (0,0)).
            pl.BlockSpec((n_pad, d_pad), lambda l, i: (0, 0)),
            # Next layer's W^T (index clamped on the last layer, where unused).
            pl.BlockSpec((1, d_pad, d_pad),
                         lambda l, i: (jnp.minimum(l + 1, num_layers - 1), 0, 0)),
            # This layer's bias.
            pl.BlockSpec((1, 1, d_pad), lambda l, i: (l, 0, 0)),
        ],
        out_specs=[
            pl.BlockSpec((1, tm, d_pad), lambda l, i: (l, i, 0)),   # node_states
            pl.BlockSpec((tm, d_pad), lambda l, i: (i, 0)),         # node_feature
        ],
        scratch_shapes=(
            [pltpu.VMEM((2 * n_pad, d_pad), jnp.bfloat16)]          # XW ping-pong
            + ([pltpu.VMEM((n_pad, n_pad), jnp.bfloat16),           # resident A_hat
                pltpu.SemaphoreType.DMA(())] if a_resident else [])
        ),
    )

    kernel = functools.partial(
        fused_gcn_stack_kernel, tm=tm, n_pad=n_pad, num_layers=num_layers,
        apply_l2norm=l2norm, a_resident=a_resident)

    states_pad, feat_pad = pl.pallas_call(
        kernel,
        out_shape=(
            jax.ShapeDtypeStruct((num_layers, n_pad, d_pad), jnp.float32),
            jax.ShapeDtypeStruct((n_pad, d_pad), jnp.float32),
        ),
        grid_spec=grid_spec,
        compiler_params=pltpu.CompilerParams(
            # Both axes sequential: the XW ping-pong carry is per-core scratch.
            # TODO(synk): on v7x, shard the row-tile axis over the 2 TensorCores
            # (core_map + VMEM_SHARED XW scratch) for up to ~2x in the resident
            # (compute-bound) regime.
            dimension_semantics=("arbitrary", "arbitrary"),
            vmem_limit_bytes=vmem_limit),
    )(a_hat, xw0, wT, b)

    node_feature = feat_pad[:n, :d]
    node_states = [states_pad[i, :n, :d] for i in range(num_layers)]
    return node_feature, node_states


def gnn_stack_reference(x, edge_index, weights, biases, l2norm=True):
    """Pure-JAX f32 reference for a loose numerical sanity check."""
    a_hat = build_gcn_norm_adj(edge_index, x.shape[0])
    for w, b in zip(weights, biases):
        x = jnp.maximum(a_hat @ (x @ jnp.asarray(w).T) + jnp.asarray(b).reshape(1, -1), 0.0)
    if l2norm:
        nrm = jnp.sqrt(jnp.sum(x * x, axis=-1, keepdims=True))
        x = x / jnp.maximum(nrm, 1e-12)
    return x


# ------------------------------ main ---------------------------------------- #

if __name__ == "__main__":
    # Small, self-consistent shapes. StaticGNN's convs are GCNConv(d_in, d_in),
    # so the stack only type-checks when dim_in == dim_out; hidden dim 32.
    N_NODES = 16
    DIM = 32
    NUM_LAYERS = 2

    key = jax.random.PRNGKey(0)
    k_x, k_adj, k_w = jax.random.split(key, 3)

    # Node features [N, D]
    x = jax.random.normal(k_x, (N_NODES, DIM), dtype=jnp.float32)

    # Random symmetric edge set (no self loops; gcn_norm adds them)
    mask = jax.random.uniform(k_adj, (N_NODES, N_NODES)) < 0.25
    mask = jnp.logical_or(mask, mask.T)
    mask = jnp.logical_and(mask, ~jnp.eye(N_NODES, dtype=bool))
    src, dst = jnp.nonzero(mask)
    edge_index = jnp.stack([src, dst]).astype(jnp.int32)   # [2, E]

    # Deterministic parameter init: Glorot weights [D, D], zero bias (GCNConv default)
    weights, biases = [], []
    for _ in range(NUM_LAYERS):
        k_w, sub = jax.random.split(k_w)
        limit = jnp.sqrt(6.0 / (DIM + DIM))
        w = jax.random.uniform(sub, (DIM, DIM), minval=-limit, maxval=limit,
                               dtype=jnp.float32)
        b = jnp.zeros((1, DIM), dtype=jnp.float32)
        weights.append(w)
        biases.append(b)

    node_feature, node_states = gnn_stack_stage(
        x, edge_index, weights, biases, l2norm=True)
    jax.block_until_ready(node_feature)
    jax.block_until_ready(node_states)

    assert node_feature.shape == (N_NODES, DIM)
    assert len(node_states) == NUM_LAYERS
    assert all(s.shape == (N_NODES, DIM) for s in node_states)

    # Loose sanity check vs pure-f32 reference (kernel uses bf16 MXU operands).
    ref = gnn_stack_reference(x, edge_index, weights, biases, l2norm=True)
    max_err = float(jnp.max(jnp.abs(node_feature - ref)))
    assert max_err < 0.2, f"max abs error too large: {max_err}"

    print("KERNEL_OK")
</pallas_src>

<mosaic_0001>
module attributes {stable_mosaic.version = 11 : i64} {
  func.func @fused_gcn_stack_kernel(%arg0: i32, %arg1: i32, %arg2: memref<128x128xbf16, #tpu.memory_space<any>>, %arg3: memref<128x128xbf16, #tpu.memory_space<vmem>>, %arg4: memref<1x128x128xbf16, #tpu.memory_space<vmem>>, %arg5: memref<1x1x128xf32, #tpu.memory_space<vmem>>, %arg6: memref<1x128x128xf32, #tpu.memory_space<vmem>>, %arg7: memref<128x128xf32, #tpu.memory_space<vmem>>, %arg8: memref<256x128xbf16, #tpu.memory_space<vmem>>, %arg9: memref<128x128xbf16, #tpu.memory_space<vmem>>, %arg10: memref<!tpu.dma_semaphore, #tpu.memory_space<semaphore_mem>>) attributes {dimension_semantics = [#tpu.dimension_semantics<arbitrary>, #tpu.dimension_semantics<arbitrary>], iteration_bounds = array<i64: 2, 1>, scalar_prefetch = 0 : i64, scratch_operands = 3 : i64, tpu.core_type = #tpu.core_type<tc>, window_params = [{}, {pipeline_mode = #tpu.pipeline_mode<synchronous>, transform_indices = @transform_1, window_bounds = array<i64: 128, 128>}, {transform_indices = @transform_2, window_bounds = array<i64: 1, 128, 128>}, {transform_indices = @transform_3, window_bounds = array<i64: 1, 1, 128>}, {transform_indices = @transform_4, window_bounds = array<i64: 1, 128, 128>}, {transform_indices = @transform_5, window_bounds = array<i64: 128, 128>}]} {
    %c0_i32 = arith.constant 0 : i32
    %0 = arith.cmpi eq, %arg0, %c0_i32 : i32
    %c0_i32_0 = arith.constant 0 : i32
    %1 = arith.cmpi eq, %arg1, %c0_i32_0 : i32
    %2 = arith.andi %0, %1 : i1
    %3 = arith.extui %2 : i1 to i32
    %c0_i32_1 = arith.constant 0 : i32
    %4 = arith.cmpi ne, %3, %c0_i32_1 : i32
    scf.if %4 {
      tpu.enqueue_dma source(%arg2 : memref<128x128xbf16, #tpu.memory_space<any>>) target(%arg9 : memref<128x128xbf16, #tpu.memory_space<vmem>>) target_semaphore(%arg10 : memref<!tpu.dma_semaphore, #tpu.memory_space<semaphore_mem>>)
      tpu.wait_dma2 semaphore(%arg10 : memref<!tpu.dma_semaphore, #tpu.memory_space<semaphore_mem>>) src(%arg2 : memref<128x128xbf16, #tpu.memory_space<any>>) dst(%arg9 : memref<128x128xbf16, #tpu.memory_space<vmem>>)
    } else {
    }
    %5 = arith.extui %2 : i1 to i32
    %c0_i32_2 = arith.constant 0 : i32
    %6 = arith.cmpi ne, %5, %c0_i32_2 : i32
    scf.if %6 {
      %c0_28 = arith.constant 0 : index
      %c0_29 = arith.constant 0 : index
      %54 = vector.load %arg3[%c0_28, %c0_29] : memref<128x128xbf16, #tpu.memory_space<vmem>>, vector<128x128xbf16>
      %c0_30 = arith.constant 0 : index
      %c0_31 = arith.constant 0 : index
      %55 = vector.load %arg8[%c0_30, %c0_31] : memref<256x128xbf16, #tpu.memory_space<vmem>>, vector<128x128xbf16>
      tpu.vector_store %arg8[%c0_30, %c0_31], %54 {strides = array<i32>} : memref<256x128xbf16, #tpu.memory_space<vmem>>, vector<128x128xbf16>,
    } else {
    }
    %c128_i32 = arith.constant 128 : i32
    %7 = arith.muli %arg1, %c128_i32 : i32
    %8 = tpu.assume_multiple %7, 128 : i32
    %c2_i32 = arith.constant 2 : i32
    %c0_i32_3 = arith.constant 0 : i32
    %9 = arith.cmpi eq, %c2_i32, %c0_i32_3 : i32
    %c1_i32 = arith.constant 1 : i32
    %10 = arith.select %9, %c1_i32, %c2_i32 : i32
    %11 = arith.remsi %arg0, %10 : i32
    %c0_i32_4 = arith.constant 0 : i32
    %12 = arith.cmpi ne, %11, %c0_i32_4 : i32
    %c0_i32_5 = arith.constant 0 : i32
    %13 = arith.cmpi slt, %11, %c0_i32_5 : i32
    %c0_i32_6 = arith.constant 0 : i32
    %14 = arith.cmpi slt, %10, %c0_i32_6 : i32
    %15 = arith.xori %13, %14 : i1
    %16 = arith.andi %15, %12 : i1
    %17 = arith.addi %11, %10 : i32
    %18 = arith.select %16, %17, %11 : i32
    %c128_i32_7 = arith.constant 128 : i32
    %19 = arith.muli %18, %c128_i32_7 : i32
    %20 = tpu.assume_multiple %19, 128 : i32
    %c1_i32_8 = arith.constant 1 : i32
    %21 = arith.addi %arg0, %c1_i32_8 : i32
    %c2_i32_9 = arith.constant 2 : i32
    %c0_i32_10 = arith.constant 0 : i32
    %22 = arith.cmpi eq, %c2_i32_9, %c0_i32_10 : i32
    %c1_i32_11 = arith.constant 1 : i32
    %23 = arith.select %22, %c1_i32_11, %c2_i32_9 : i32
    %24 = arith.remsi %21, %23 : i32
    %c0_i32_12 = arith.constant 0 : i32
    %25 = arith.cmpi ne, %24, %c0_i32_12 : i32
    %c0_i32_13 = arith.constant 0 : i32
    %26 = arith.cmpi slt, %24, %c0_i32_13 : i32
    %c0_i32_14 = arith.constant 0 : i32
    %27 = arith.cmpi slt, %23, %c0_i32_14 : i32
    %28 = arith.xori %26, %27 : i1
    %29 = arith.andi %28, %25 : i1
    %30 = arith.addi %24, %23 : i32
    %31 = arith.select %29, %30, %24 : i32
    %c128_i32_15 = arith.constant 128 : i32
    %32 = arith.muli %31, %c128_i32_15 : i32
    %33 = tpu.assume_multiple %32, 128 : i32
    %34 = arith.index_cast %8 : i32 to index
    %c0 = arith.constant 0 : index
    %35 = vector.load %arg9[%34, %c0] : memref<128x128xbf16, #tpu.memory_space<vmem>>, vector<128x128xbf16>
    %36 = arith.index_cast %20 : i32 to index
    %c0_16 = arith.constant 0 : index
    %37 = vector.load %arg8[%36, %c0_16] : memref<256x128xbf16, #tpu.memory_space<vmem>>, vector<128x128xbf16>
    %cst = arith.constant dense<0.000000e+00> : vector<128x128xf32>
    %38 = tpu.matmul %35, %37, %cst {dimension_numbers = #tpu.dot_dimension_numbers<[1], [0], [0], [1], [0, 0, 1, 1], [], []>} : vector<128x128xbf16>, vector<128x128xbf16>, vector<128x128xf32> -> vector<128x128xf32>
    %c0_17 = arith.constant 0 : index
    %c0_18 = arith.constant 0 : index
    %c0_19 = arith.constant 0 : index
    %39 = vector.load %arg5[%c0_17, %c0_18, %c0_19] : memref<1x1x128xf32, #tpu.memory_space<vmem>>, vector<1x1x128xf32>
    %40 = vector.shape_cast %39 : vector<1x1x128xf32> to vector<1x128xf32>
    %41 = vector.broadcast %40 : vector<1x128xf32> to vector<128x128xf32>
    %42 = arith.addf %38, %41 : vector<128x128xf32>
    %cst_20 = arith.constant 0.000000e+00 : f32
    %43 = vector.broadcast %cst_20 : f32 to vector<128x128xf32>
    %44 = arith.maximumf %42, %43 : vector<128x128xf32>
    %c0_21 = arith.constant 0 : index
    %c0_22 = arith.constant 0 : index
    %c0_23 = arith.constant 0 : index
    %45 = vector.load %arg6[%c0_21, %c0_22, %c0_23] : memref<1x128x128xf32, #tpu.memory_space<vmem>>, vector<1x128x128xf32>
    %46 = vector.shape_cast %45 : vector<1x128x128xf32> to vector<128x128xf32>
    %47 = vector.shape_cast %44 : vector<128x128xf32> to vector<1x128x128xf32>
    tpu.vector_store %arg6[%c0_21, %c0_22, %c0_23], %47 {strides = array<i32>} : memref<1x128x128xf32, #tpu.memory_space<vmem>>, vector<1x128x128xf32>,
    %c1_i32_24 = arith.constant 1 : i32
    %48 = arith.cmpi slt, %arg0, %c1_i32_24 : i32
    %49 = arith.extui %48 : i1 to i32
    %c0_i32_25 = arith.constant 0 : i32
    %50 = arith.cmpi ne, %49, %c0_i32_25 : i32
    scf.if %50 {
      %54 = arith.truncf %44 : vector<128x128xf32> to vector<128x128xbf16>
      %c0_28 = arith.constant 0 : index
      %c0_29 = arith.constant 0 : index
      %c0_30 = arith.constant 0 : index
      %55 = vector.load %arg4[%c0_28, %c0_29, %c0_30] : memref<1x128x128xbf16, #tpu.memory_space<vmem>>, vector<1x128x128xbf16>
      %56 = vector.shape_cast %55 : vector<1x128x128xbf16> to vector<128x128xbf16>
      %cst_31 = arith.constant dense<0.000000e+00> : vector<128x128xf32>
      %57 = tpu.matmul %54, %56, %cst_31 {dimension_numbers = #tpu.dot_dimension_numbers<[1], [0], [0], [1], [0, 0, 1, 1], [], []>} : vector<128x128xbf16>, vector<128x128xbf16>, vector<128x128xf32> -> vector<128x128xf32>
      %58 = arith.truncf %57 : vector<128x128xf32> to vector<128x128xbf16>
      %59 = arith.addi %33, %8 : i32
      %60 = arith.index_cast %59 : i32 to index
      %c0_32 = arith.constant 0 : index
      %61 = vector.load %arg8[%60, %c0_32] : memref<256x128xbf16, #tpu.memory_space<vmem>>, vector<128x128xbf16>
      tpu.vector_store %arg8[%60, %c0_32], %58 {strides = array<i32>} : memref<256x128xbf16, #tpu.memory_space<vmem>>, vector<128x128xbf16>,
    } else {
    }
    %c1_i32_26 = arith.constant 1 : i32
    %51 = arith.cmpi eq, %arg0, %c1_i32_26 : i32
    %52 = arith.extui %51 : i1 to i32
    %c0_i32_27 = arith.constant 0 : i32
    %53 = arith.cmpi ne, %52, %c0_i32_27 : i32
    scf.if %53 {
      %54 = arith.mulf %44, %44 : vector<128x128xf32>
      %cst_28 = arith.constant dense<0.000000e+00> : vector<128xf32>
      %55 = vector.multi_reduction <add>, %54, %cst_28 [1] : vector<128x128xf32> to vector<128xf32>
      %56 = vector.shape_cast %55 : vector<128xf32> to vector<128x1xf32>
      %cst_29 = arith.constant 1.000000e-24 : f32
      %57 = vector.broadcast %cst_29 : f32 to vector<128x1xf32>
      %58 = arith.maximumf %56, %57 : vector<128x1xf32>
      %59 = math.rsqrt %58 : vector<128x1xf32>
      %60 = vector.broadcast %59 : vector<128x1xf32> to vector<128x128xf32>
      %61 = arith.mulf %44, %60 : vector<128x128xf32>
      %c0_30 = arith.constant 0 : index
      %c0_31 = arith.constant 0 : index
      %62 = vector.load %arg7[%c0_30, %c0_31] : memref<128x128xf32, #tpu.memory_space<vmem>>, vector<128x128xf32>
      tpu.vector_store %arg7[%c0_30, %c0_31], %61 {strides = array<i32>} : memref<128x128xf32, #tpu.memory_space<vmem>>, vector<128x128xf32>,
    } else {
    }
    return
  }
  func.func @transform_1(%arg0: i32, %arg1: i32) -> (i32, i32) {
    %c0_i32 = arith.constant 0 : i32
    %c0_i32_0 = arith.constant 0 : i32
    %c0_i32_1 = arith.constant 0 : i32
    return %c0_i32, %c0_i32_0 : i32, i32
  }
  func.func @transform_2(%arg0: i32, %arg1: i32) -> (i32, i32, i32) {
    %c1_i32 = arith.constant 1 : i32
    %0 = arith.addi %arg0, %c1_i32 : i32
    %c1_i32_0 = arith.constant 1 : i32
    %1 = arith.minsi %0, %c1_i32_0 : i32
    %c0_i32 = arith.constant 0 : i32
    %c0_i32_1 = arith.constant 0 : i32
    %c0_i32_2 = arith.constant 0 : i32
    return %1, %c0_i32, %c0_i32_1 : i32, i32, i32
  }
  func.func @transform_3(%arg0: i32, %arg1: i32) -> (i32, i32, i32) {
    %c0_i32 = arith.constant 0 : i32
    %c0_i32_0 = arith.constant 0 : i32
    %c0_i32_1 = arith.constant 0 : i32
    return %arg0, %c0_i32, %c0_i32_0 : i32, i32, i32
  }
  func.func @transform_4(%arg0: i32, %arg1: i32) -> (i32, i32, i32) {
    %c0_i32 = arith.constant 0 : i32
    %c0_i32_0 = arith.constant 0 : i32
    return %arg0, %arg1, %c0_i32 : i32, i32, i32
  }
  func.func @transform_5(%arg0: i32, %arg1: i32) -> (i32, i32) {
    %c0_i32 = arith.constant 0 : i32
    %c0_i32_0 = arith.constant 0 : i32
    return %arg1, %c0_i32 : i32, i32
  }
}

</mosaic_0001>

<llo_original>
// kernel: tpu_custom_call.1
$region0: #{tpu_custom_call.1}
  #allocation0 [shape = 'u32[]', space=smem, size = 0x4, offset = 0x4, fixed_abs, tag = 'smem constant byte address 0x4 - core index']
  #allocation1 [shape = 'u32[144,128]{1,0:T(1,128)}', space=vmem, size = 0x12000, scoped, tag = 'internal scratch']
  #allocation2 [shape = 'bf16[256,128]{1,0:T(16,128)(2,1)}', space=vmem, size = 0x10000, scoped, tag = 'scratch operand']
  #allocation3 [shape = 'bf16[128,128]{1,0:T(16,128)(2,1)}', space=vmem, size = 0x8000, scoped, tag = 'scratch operand']
  #allocation4 [shape = 's32[1]{0}', space=sflag, size = 0x4, scoped, tag = 'scratch operand']
  #allocation13 [shape = 's32[]', space=sflag, size = 0x4, offset = 0, fixed_abs, tag = 'sflag constant byte address 0x0 - dummy sync flag']
  #allocation14 [shape = 's32[]', space=sflag, size = 0x4, offset = 0, fixed_abs, tag = 'sflag constant byte address 0x0 - dummy sync flag']
  #allocation15 [shape = 'u32[]', space=smem, size = 0x4, offset = 0x44, fixed_abs, tag = 'smem constant byte address 0x44 - assertion arg 0']
  #allocation16 [shape = 'u32[]', space=smem, size = 0x4, offset = 0x48, fixed_abs, tag = 'smem constant byte address 0x48 - assertion arg 1']
  %s0 = inlined_call_operand.hbm [shape: bf16[128,128], index: 0, kind: input, shape index: {}]
  %s1 = inlined_call_operand.hbm [shape: bf16[128,128], index: 1, kind: input, shape index: {}]
  %s2 = inlined_call_operand.hbm [shape: bf16[2,128,128], index: 2, kind: input, shape index: {}]
  %s3 = inlined_call_operand.vmem [shape: f32[2,1,128], index: 3, kind: input, shape index: {}]
  %s4 = inlined_call_operand.hbm [shape: f32[2,128,128], index: 4, kind: output, shape index: {0}]
  %s5 = inlined_call_operand.hbm [shape: f32[128,128], index: 5, kind: output, shape index: {1}]
  %6 = xla_tuple %s4, %s5
  %s7 = sld [smem:[#allocation0]]
  $region77: #{tpu_custom_call.1} parent=0
    _
  %s9 = ssub.s32 1, %s7
  %s10 = scalar_select 0, %s9, %s7
  $region1: #{tpu_custom_call.1} parent=0
    #allocation5 [shape = 'u8[32768]{0}', space=vmem, size = 0x8000, scoped, tag = 'input window, operand 1, single buffered']
    #allocation6 [shape = 's32[2]{0}', space=sflag, size = 0x8, scoped, tag = 'scoped memory for tpu_custom_call.1']
    #allocation7 [shape = 's32[2]{0}', space=sflag, size = 0x8, scoped, tag = 'scoped memory for tpu_custom_call.1']
    #allocation8 [shape = 'u8[65536]{0}', space=vmem, size = 0x10000, scoped, tag = 'input window, operand 2']
    #allocation9 [shape = 's32[2]{0}', space=sflag, size = 0x8, scoped, tag = 'scoped memory for tpu_custom_call.1']
    #allocation10 [shape = 'u8[131072]{0}', space=vmem, size = 0x20000, scoped, tag = 'output window, operand 0']
    #allocation11 [shape = 'u8[65536]{0}', space=vmem, size = 0x10000, scoped, tag = 'output window, operand 1, single buffered']
    #allocation12 [shape = 's32[1]{0}', space=sflag, size = 0x4, scoped, tag = 'scoped memory for tpu_custom_call.1']
    %11 = vsyncpa [#allocation6], 0
    %12 = vsyncpa [#allocation9], 0
    %s13 = scalar_lea.sflag [#allocation9], 1
    %14 = vsyncpa %s13, 0
    %15 = vsyncpa [#allocation7], 0
    %s16 = scalar_lea.sflag [#allocation7], 1
    %17 = vsyncpa %s16, 0
    %18 = vsyncpa [#allocation12], 0
    loop: start=0, step=1, limit=4
    $region2: #{tpu_custom_call.1} parent=1 // loop_pre_header
      _
    $region3: #{tpu_custom_call.1} parent=1 // loop_header
      %s20 = sphi 0, %s24
      %p21 = scmp.ge.s32.totalorder %s20, 4
      %s27 = sphi 0, %s39
      %s28 = sphi 0, %s35
      %s29 = sphi 0, %s27
      %s30 = sphi 0, %s28
      %s31 = sphi 0, %s29
      %s32 = sphi 0, %s30
      %s40 = sphi 0, %s40
      %s42 = sphi 0, %s40
      %s43 = sphi 0, %s42
      %s57 = sphi 0, %s43
      %s69 = sphi 0, %s71
      %s72 = sphi 0, %s69
      %s73 = sphi 0, %s72
      %s89 = sphi 0, %s73
      %s95 = sphi 0, %s97
      %s98 = sphi 0, %s95
      %s99 = sphi 0, %s98
      %s115 = sphi 0, %s99
      %s123 = sphi 0, %s125
      %s126 = sphi 0, %s123
      %s127 = sphi 0, %s126
      %s143 = sphi 0, %s127
      %s149 = sphi 0, %s151
      %s152 = sphi 0, %s149
      %s153 = sphi 0, %s152
      %s169 = sphi 0, %s153
    $region4: #{tpu_custom_call.1} parent=1 // loop_header_branch
      %23 = sbr.rel (%p21) target = $region8
    $region5: #{tpu_custom_call.1} parent=1 // loop_body
      %s25 = ssub.s32 %s20, 1
      %s26 = ssub.s32 %s20, 2
      %s33 = sadd.s32 1, %s28
      %p34 = scmp.ge.s32.totalorder %s33, 1
      %s35 = scalar_select %p34, 0, %s33
      %s36 = sadd.s32 1, %s27
      %s37 = scalar_select %p34, %s36, %s27
      %p38 = scmp.ge.s32.totalorder %s37, 2
      %s39 = scalar_select %p38, 0, %s37
      %s41 = sadd.s32 %s40, 1
      %p44 = scmp.eq.s32.totalorder %s20, 1
      %p45 = scmp.ne.s32.totalorder %s40, %s42
      %p46 = scmp.eq.s32.totalorder %s20, 0
      %p47 = por %p45, %p46
      %p48 = scmp.ne.s32.totalorder %s40, %s42
      %p49 = scmp.eq.s32.totalorder %s25, 1
      %p50 = por %p48, %p49
      %p51 = scmp.ne.s32.totalorder %s42, %s43
      %p52 = scmp.eq.s32.totalorder %s25, 0
      %p53 = por %p51, %p52
      %p54 = scmp.ne.s32.totalorder %s42, %s43
      %p55 = scmp.eq.s32.totalorder %s26, 1
      %p56 = por %p54, %p55
      %p58 = scmp.ne.s32.totalorder %s43, %s57
      %p59 = scmp.eq.s32.totalorder %s26, 0
      %p60 = por %p58, %p59
      %s61 = sadd.s32 %s27, 1
      %p62 = scmp.lt.s32.totalorder %s61, 1
      %s63 = scalar_select %p62, %s61, 1
      %s64 = sadd.s32 %s39, 1
      %p65 = scmp.lt.s32.totalorder %s64, 1
      %s66 = scalar_select %p65, %s64, 1
      %s67 = ssub.s32 %s63, %s66
      %p68 = scmp.eq.s32.totalorder %s67, 0
      %s70 = sadd.s32 %s69, 1
      %s71 = scalar_select %p68, %s69, %s70
      %p74 = pneg %p68
      %p75 = scmp.eq.s32.totalorder %s20, 1
      %p76 = por %p74, %p75
      %p77 = scmp.ne.s32.totalorder %s69, %s72
      %p78 = scmp.eq.s32.totalorder %s20, 0
      %p79 = por %p77, %p78
      %p80 = scmp.ne.s32.totalorder %s69, %s72
      %p81 = scmp.eq.s32.totalorder %s25, 1
      %p82 = por %p80, %p81
      %p83 = scmp.ne.s32.totalorder %s72, %s73
      %p84 = scmp.eq.s32.totalorder %s25, 0
      %p85 = por %p83, %p84
      %p86 = scmp.ne.s32.totalorder %s72, %s73
      %p87 = scmp.eq.s32.totalorder %s26, 1
      %p88 = por %p86, %p87
      %p90 = scmp.ne.s32.totalorder %s73, %s89
      %p91 = scmp.eq.s32.totalorder %s26, 0
      %p92 = por %p90, %p91
      %s93 = ssub.s32 %s27, %s39
      %p94 = scmp.eq.s32.totalorder %s93, 0
      %s96 = sadd.s32 %s95, 1
      %s97 = scalar_select %p94, %s95, %s96
      %p100 = pneg %p94
      %p101 = scmp.eq.s32.totalorder %s20, 1
      %p102 = por %p100, %p101
      %p103 = scmp.ne.s32.totalorder %s95, %s98
      %p104 = scmp.eq.s32.totalorder %s20, 0
      %p105 = por %p103, %p104
      %p106 = scmp.ne.s32.totalorder %s95, %s98
      %p107 = scmp.eq.s32.totalorder %s25, 1
      %p108 = por %p106, %p107
      %p109 = scmp.ne.s32.totalorder %s98, %s99
      %p110 = scmp.eq.s32.totalorder %s25, 0
      %p111 = por %p109, %p110
      %p112 = scmp.ne.s32.totalorder %s98, %s99
      %p113 = scmp.eq.s32.totalorder %s26, 1
      %p114 = por %p112, %p113
      %p116 = scmp.ne.s32.totalorder %s99, %s115
      %p117 = scmp.eq.s32.totalorder %s26, 0
      %p118 = por %p116, %p117
      %s119 = ssub.s32 %s27, %s39
      %s120 = ssub.s32 %s28, %s35
      %s121 = sor.u32 %s119, %s120
      %p122 = scmp.eq.s32.totalorder %s121, 0
      %s124 = sadd.s32 %s123, 1
      %s125 = scalar_select %p122, %s123, %s124
      %p128 = pneg %p122
      %p129 = scmp.eq.s32.totalorder %s20, 1
      %p130 = por %p128, %p129
      %p131 = scmp.ne.s32.totalorder %s123, %s126
      %p132 = scmp.eq.s32.totalorder %s20, 0
      %p133 = por %p131, %p132
      %p134 = scmp.ne.s32.totalorder %s123, %s126
      %p135 = scmp.eq.s32.totalorder %s25, 1
      %p136 = por %p134, %p135
      %p137 = scmp.ne.s32.totalorder %s126, %s127
      %p138 = scmp.eq.s32.totalorder %s25, 0
      %p139 = por %p137, %p138
      %p140 = scmp.ne.s32.totalorder %s126, %s127
      %p141 = scmp.eq.s32.totalorder %s26, 1
      %p142 = por %p140, %p141
      %p144 = scmp.ne.s32.totalorder %s127, %s143
      %p145 = scmp.eq.s32.totalorder %s26, 0
      %p146 = por %p144, %p145
      %s147 = ssub.s32 %s28, %s35
      %p148 = scmp.eq.s32.totalorder %s147, 0
      %s150 = sadd.s32 %s149, 1
      %s151 = scalar_select %p148, %s149, %s150
      %p154 = pneg %p148
      %p155 = scmp.eq.s32.totalorder %s20, 1
      %p156 = por %p154, %p155
      %p157 = scmp.ne.s32.totalorder %s149, %s152
      %p158 = scmp.eq.s32.totalorder %s20, 0
      %p159 = por %p157, %p158
      %p160 = scmp.ne.s32.totalorder %s149, %s152
      %p161 = scmp.eq.s32.totalorder %s25, 1
      %p162 = por %p160, %p161
      %p163 = scmp.ne.s32.totalorder %s152, %s153
      %p164 = scmp.eq.s32.totalorder %s25, 0
      %p165 = por %p163, %p164
      %p166 = scmp.ne.s32.totalorder %s152, %s153
      %p167 = scmp.eq.s32.totalorder %s26, 1
      %p168 = por %p166, %p167
      %p170 = scmp.ne.s32.totalorder %s153, %s169
      %p171 = scmp.eq.s32.totalorder %s26, 0
      %p172 = por %p170, %p171
      %p173 = scmp.le.s32.totalorder 1, %s20
      %p174 = scmp.lt.s32.totalorder %s20, 3
      %p175 = pnand %p173, %p174
      %p176 = pneg %p175
      // Predicated region
      $region9: #{tpu_custom_call.1} parent=5 // pred_check
        _
      $region10: #{tpu_custom_call.1} parent=5 // pred_check_branch
        %178 = sbr.rel (%p175) target = $region12
      $region11: #{tpu_custom_call.1} parent=5 // pred_region
        %s179 = ssub.s32 %s20, 1
        // Predicated region
        $region13: #{tpu_custom_call.1} parent=11 // pred_check
          %p180 = pneg %p53
        $region14: #{tpu_custom_call.1} parent=11 // pred_check_branch
          %182 = sbr.rel (%p180) target = $region16
        $region15: #{tpu_custom_call.1} parent=11 // pred_region
          %s184 = ssub.s32 1024, 1024
          %185 = vsyncadd [#allocation6], %s184
          %s186 = sshll.u32 [#allocation5], 4
          %s187 = int_to_ptr.vmem [resolvable:$true] %s186
          %192 = dma.hbm_to_vmem [thread:$0]  %s1, 1024, %s187, [#allocation6], 64, 64, 4
        $region16: #{tpu_custom_call.1} parent=11 // pred_fallthru
          _
      $region12: #{tpu_custom_call.1} parent=5 // pred_fallthru
        _
      %p193 = scmp.lt.s32.totalorder %s20, 2
      // Predicated region
      $region17: #{tpu_custom_call.1} parent=5 // pred_check
        %p194 = pneg %p193
      $region18: #{tpu_custom_call.1} parent=5 // pred_check_branch
        %196 = sbr.rel (%p194) target = $region20
      $region19: #{tpu_custom_call.1} parent=5 // pred_region
        // Predicated region
        $region21: #{tpu_custom_call.1} parent=19 // pred_check
          %p197 = pneg %p79
        $region22: #{tpu_custom_call.1} parent=19 // pred_check_branch
          %199 = sbr.rel (%p197) target = $region24
        $region23: #{tpu_custom_call.1} parent=19 // pred_region
          %s200 = sand.u32 %s69, 1
          %s201 = scalar_lea.sflag [#allocation9], %s200
          %s202 = sand.u32 %s69, 1
          %s203 = smul.addr %s202, 64
          %s204 = scalar_lea.vmem [#allocation8], %s203
          %s205 = sadd.s32 %s27, 1
          %p206 = scmp.lt.s32.totalorder %s205, 1
          %s207 = scalar_select %p206, %s205, 1
          %s209 = ssub.s32 1024, 1024
          %210 = vsyncadd %s201, %s209
          %s211 = smul.addr %s207, 16
          %s212 = smul.addr %s211, 64
          %s213 = scalar_lea.hbm %s2, %s212
          %s214 = sshll.u32 %s204, 4
          %s215 = int_to_ptr.vmem [resolvable:$true] %s214
          %220 = dma.hbm_to_vmem [thread:$0]  %s213, 1024, %s215, %s201, 64, 64, 4
        $region24: #{tpu_custom_call.1} parent=19 // pred_fallthru
          _
        // Predicated region
        $region25: #{tpu_custom_call.1} parent=19 // pred_check
          %p221 = pneg %p105
        $region26: #{tpu_custom_call.1} parent=19 // pred_check_branch
          %223 = sbr.rel (%p221) target = $region28
        $region27: #{tpu_custom_call.1} parent=19 // pred_region
          %p224 = scmp.lt.s32.totalorder %s27, 1
          %s225 = scalar_select %p224, %s27, 1
          %s226 = scalar_lea.vmem %s3, %s225
        $region28: #{tpu_custom_call.1} parent=19 // pred_fallthru
          _
      $region20: #{tpu_custom_call.1} parent=5 // pred_fallthru
        _
      %p227 = scmp.le.s32.totalorder 1, %s20
      %p228 = scmp.lt.s32.totalorder %s20, 3
      %p229 = pnand %p227, %p228
      %p230 = pneg %p229
      // Predicated region
      $region29: #{tpu_custom_call.1} parent=5 // pred_check
        _
      $region30: #{tpu_custom_call.1} parent=5 // pred_check_branch
        %232 = sbr.rel (%p229) target = $region32
      $region31: #{tpu_custom_call.1} parent=5 // pred_region
        %s233 = ssub.s32 %s20, 1
        // Predicated region
        $region33: #{tpu_custom_call.1} parent=31 // pred_check
          %p234 = pneg %p53
        $region34: #{tpu_custom_call.1} parent=31 // pred_check_branch
          %236 = sbr.rel (%p234) target = $region36
        $region35: #{tpu_custom_call.1} parent=31 // pred_region
          %237 = dma.done [#allocation6], 1024
        $region36: #{tpu_custom_call.1} parent=31 // pred_fallthru
          _
        %s238 = sand.u32 %s72, 1
        %s239 = scalar_lea.sflag [#allocation9], %s238
        %s240 = sand.u32 %s72, 1
        %s241 = smul.addr %s240, 64
        %s242 = scalar_lea.vmem [#allocation8], %s241
        // Predicated region
        $region37: #{tpu_custom_call.1} parent=31 // pred_check
          %p243 = pneg %p85
        $region38: #{tpu_custom_call.1} parent=31 // pred_check_branch
          %245 = sbr.rel (%p243) target = $region40
        $region39: #{tpu_custom_call.1} parent=31 // pred_region
          %246 = dma.done %s239, 1024
        $region40: #{tpu_custom_call.1} parent=31 // pred_fallthru
          _
        %p247 = pneg %p53
        %p248 = pneg %p50
        %s249 = sand.u32 %s72, 1
        %s250 = scalar_lea.sflag [#allocation9], %s249
        %s251 = sand.u32 %s72, 1
        %s252 = smul.addr %s251, 64
        %s253 = scalar_lea.vmem [#allocation8], %s252
        %p254 = pneg %p85
        %p255 = pneg %p82
        %p256 = scmp.lt.s32.totalorder %s29, 1
        %s257 = scalar_select %p256, %s29, 1
        %s258 = scalar_lea.vmem %s3, %s257
        %p259 = pneg %p111
        %p260 = pneg %p108
        %p261 = pneg %p139
        %p262 = pneg %p136
        %s263 = sand.u32 %s126, 1
        %s264 = scalar_lea.sflag [#allocation7], %s263
        %s265 = sand.u32 %s126, 1
        %s266 = smul.addr %s265, 128
        %s267 = scalar_lea.vmem [#allocation10], %s266
        %p268 = pneg %p165
        %p269 = pneg %p162
        %s270 = sadd.s32 %s29, 1
        %p271 = scmp.lt.s32.totalorder %s270, 1
        %s272 = scalar_select %p271, %s270, 1
        %p273 = scmp.lt.s32.totalorder %s29, 1
        %s274 = scalar_select %p273, %s29, 1
        %s275 = scalar_lea.vmem %s3, %s274
        %s276 = smul.u32 16, %s30
        %s277 = smul.u32 16, %s30
        %p279 = scmp.eq.s32.totalorder %s29, 0
        %p280 = scmp.eq.s32.totalorder %s30, 0
        %p281 = pnand %p279, %p280
        %p282 = pneg %p281
        // Predicated region
        $region41: #{tpu_custom_call.1} parent=31 // pred_check
          _
        $region42: #{tpu_custom_call.1} parent=31 // pred_check_branch
          %284 = sbr.rel (%p281) target = $region44
        $region43: #{tpu_custom_call.1} parent=31 // pred_region
          // Predicated region
          $region45: #{tpu_custom_call.1} parent=43 // pred_check
            _
          $region46: #{tpu_custom_call.1} parent=43 // pred_check_branch
            %286 = sbr.rel target = $region48
          $region47: #{tpu_custom_call.1} parent=43 // pred_region
            %287 = sst [smem:[#allocation15]] [#allocation14]
            %288 = sst [smem:[#allocation16]] [#allocation13]
          $region48: #{tpu_custom_call.1} parent=43 // pred_fallthru
            _
          %290 = shalt.err (0)
          %s292 = sshll.u32 [#allocation3], 4
          %s293 = int_to_ptr.vmem [resolvable:$true] %s292
          %295 = dma.hbm_to_vmem [thread:$0]  %s0, 1024, %s293, [#allocation4]
          %s296 = smul.u32 4, 16
          %s297 = smul.u32 %s296, 1
          %s298 = sshll.u32 %s297, 4
          %299 = dma.done [#allocation4], %s298
          %v300 = vld [vmem:[#allocation5] sm:$0xf]
          %v301 = vld [vmem:[#allocation5 + $0x4] sm:$0xf]
          %v302 = vld [vmem:[#allocation5 + $0x8] sm:$0xf]
          %v303 = vld [vmem:[#allocation5 + $0xc] sm:$0xf]
          %v304 = vld [vmem:[#allocation5 + $0x10] sm:$0xf]
          %v305 = vld [vmem:[#allocation5 + $0x14] sm:$0xf]
          %v306 = vld [vmem:[#allocation5 + $0x18] sm:$0xf]
          %v307 = vld [vmem:[#allocation5 + $0x1c] sm:$0xf]
          %v308 = vld [vmem:[#allocation5 + $0x20] sm:$0xf]
          %v309 = vld [vmem:[#allocation5 + $0x24] sm:$0xf]
          %v310 = vld [vmem:[#allocation5 + $0x28] sm:$0xf]
          %v311 = vld [vmem:[#allocation5 + $0x2c] sm:$0xf]
          %v312 = vld [vmem:[#allocation5 + $0x30] sm:$0xf]
          %v313 = vld [vmem:[#allocation5 + $0x34] sm:$0xf]
          %v314 = vld [vmem:[#allocation5 + $0x38] sm:$0xf]
          %v315 = vld [vmem:[#allocation5 + $0x3c] sm:$0xf]
          %v332 = vunpack.c.l.b16 %v300
          %v333 = vunpack.c.l.b16 %v301
          %v334 = vunpack.c.l.b16 %v302
          %v335 = vunpack.c.l.b16 %v303
          %v336 = vunpack.c.l.b16 %v304
          %v337 = vunpack.c.l.b16 %v305
          %v338 = vunpack.c.l.b16 %v306
          %v339 = vunpack.c.l.b16 %v307
          %v340 = vunpack.c.l.b16 %v308
          %v341 = vunpack.c.l.b16 %v309
          %v342 = vunpack.c.l.b16 %v310
          %v343 = vunpack.c.l.b16 %v311
          %v344 = vunpack.c.l.b16 %v312
          %v345 = vunpack.c.l.b16 %v313
          %v346 = vunpack.c.l.b16 %v314
          %v347 = vunpack.c.l.b16 %v315
          %v348 = vpack.c.b16 %v333, %v332
          %v349 = vpack.c.b16 %v335, %v334
          %v350 = vpack.c.b16 %v337, %v336
          %v351 = vpack.c.b16 %v339, %v338
          %v352 = vpack.c.b16 %v341, %v340
          %v353 = vpack.c.b16 %v343, %v342
          %v354 = vpack.c.b16 %v345, %v344
          %v355 = vpack.c.b16 %v347, %v346
          %364 = vst [vmem:[#allocation2] sm:$0xff] %v348
          %365 = vst [vmem:[#allocation2 + $0x8] sm:$0xff] %v349
          %366 = vst [vmem:[#allocation2 + $0x10] sm:$0xff] %v350
          %367 = vst [vmem:[#allocation2 + $0x18] sm:$0xff] %v351
          %368 = vst [vmem:[#allocation2 + $0x20] sm:$0xff] %v352
          %369 = vst [vmem:[#allocation2 + $0x28] sm:$0xff] %v353
          %370 = vst [vmem:[#allocation2 + $0x30] sm:$0xff] %v354
          %371 = vst [vmem:[#allocation2 + $0x38] sm:$0xff] %v355
        $region44: #{tpu_custom_call.1} parent=31 // pred_fallthru
          _
        %s372 = smul.u32 %s30, 128
        %p373 = scmp.lt.s32.totalorder %s29, 0
        %s374 = ssub.s32 0, %s29
        %s375 = scalar_select %p373, %s374, %s29
        %s376 = sand.u32 %s375, 1
        %s377 = ssub.s32 0, %s376
        %s378 = scalar_select %p373, %s377, %s376
        %p379 = scmp.ne.s32.totalorder %s378, 0
        %p380 = scmp.lt.s32.totalorder %s378, 0
        %p381 = pnand %p380, %p379
        %p382 = pneg %p381
        %s383 = sadd.s32 %s378, 2
        %s384 = scalar_select %p382, %s383, %s378
        %s385 = smul.u32 %s384, 128
        %s386 = sadd.s32 %s29, 1
        %p387 = scmp.lt.s32.totalorder %s386, 0
        %s388 = ssub.s32 0, %s386
        %s389 = scalar_select %p387, %s388, %s386
        %s390 = sand.u32 %s389, 1
        %s391 = ssub.s32 0, %s390
        %s392 = scalar_select %p387, %s391, %s390
        %p393 = scmp.ne.s32.totalorder %s392, 0
        %p394 = scmp.lt.s32.totalorder %s392, 0
        %p395 = pnand %p394, %p393
        %p396 = pneg %p395
        %s397 = sadd.s32 %s392, 2
        %s398 = scalar_select %p396, %s397, %s392
        %s399 = smul.u32 %s398, 128
        %s400 = sshra.s32 %s372, 4
        %s401 = sand.u32 %s372, 15
        %s402 = smul.addr %s400, 8
        %s403 = scalar_lea.vmem [#allocation3], %s402
        %v404 = vld [vmem:[%s403] sm:$0xff]
        %v405 = vld [vmem:[%s403 + $0x8] sm:$0xff]
        %v406 = vld [vmem:[%s403 + $0x10] sm:$0xff]
        %v407 = vld [vmem:[%s403 + $0x18] sm:$0xff]
        %v408 = vld [vmem:[%s403 + $0x20] sm:$0xff]
        %v409 = vld [vmem:[%s403 + $0x28] sm:$0xff]
        %v410 = vld [vmem:[%s403 + $0x30] sm:$0xff]
        %v411 = vld [vmem:[%s403 + $0x38] sm:$0xff]
        %s412 = sshra.s32 %s385, 4
        %s413 = sand.u32 %s385, 15
        %s414 = smul.addr %s412, 8
        %s415 = scalar_lea.vmem [#allocation2], %s414
        %v416 = vld [vmem:[%s415] sm:$0xff]
        %v417 = vld [vmem:[%s415 + $0x8] sm:$0xff]
        %v418 = vld [vmem:[%s415 + $0x10] sm:$0xff]
        %v419 = vld [vmem:[%s415 + $0x18] sm:$0xff]
        %v420 = vld [vmem:[%s415 + $0x20] sm:$0xff]
        %v421 = vld [vmem:[%s415 + $0x28] sm:$0xff]
        %v422 = vld [vmem:[%s415 + $0x30] sm:$0xff]
        %v423 = vld [vmem:[%s415 + $0x38] sm:$0xff]
        %v424 = vld [vmem:[%s275] sm:$0x1]
        %v426 = vlaneseq
        %v427 = vshrl.u32 %v426, 7
        %v428 = vsub.s32 0, %v427
        %v429 = vrot.slane %v424, %v428
        %431 = vmatprep.subr.bf16.mxu0 0
        %432 = vmatpush1.bf16.msra.mxu0 %v416
        %433 = vmatprep.subr.bf16.mxu0 0
        %434 = vmatpush1.bf16.msra.mxu0 %v417
        %435 = vmatprep.subr.bf16.mxu0 0
        %436 = vmatpush1.bf16.msra.mxu0 %v418
        %437 = vmatprep.subr.bf16.mxu0 0
        %438 = vmatpush1.bf16.msra.mxu0 %v419
        %439 = vmatprep.subr.bf16.mxu0 0
        %440 = vmatpush1.bf16.msra.mxu0 %v420
        %441 = vmatprep.subr.bf16.mxu0 0
        %442 = vmatpush1.bf16.msra.mxu0 %v421
        %443 = vmatprep.subr.bf16.mxu0 0
        %444 = vmatpush1.bf16.msra.mxu0 %v422
        %445 = vmatprep.subr.bf16.mxu0 0
        %446 = vmatpush1.bf16.msra.mxu0 %v423
        %447 = vmatprep.subr.bf16.mxu0 0
        %448 = vmatpush1.bf16.msra.mxu0 0
        %449 = vmatprep.subr.bf16.mxu0 0
        %450 = vmatpush1.bf16.msra.mxu0 0
        %451 = vmatprep.subr.bf16.mxu0 0
        %452 = vmatpush1.bf16.msra.mxu0 0
        %453 = vmatprep.subr.bf16.mxu0 0
        %454 = vmatpush1.bf16.msra.mxu0 0
        %455 = vmatprep.subr.bf16.mxu0 0
        %456 = vmatpush1.bf16.msra.mxu0 0
        %457 = vmatprep.subr.bf16.mxu0 0
        %458 = vmatpush1.bf16.msra.mxu0 0
        %459 = vmatprep.subr.bf16.mxu0 0
        %460 = vmatpush1.bf16.msra.mxu0 0
        %461 = vmatprep.subr.bf16.mxu0 0
        %462 = vmatpush1.bf16.msra.mxu0 0
        %463 = vmatprep.mubr.bf16.mxu0 0
        %464 = vmatmul.mubr.bf16.gmra.mrb[0].mxu0 %v404
        %v465 = vpop.f32.mrb[0].mxu0
        %v466 = vadd.f32 %v429, %v465
        %v467 = vpop.f32.mrb[0].mxu0
        %v468 = vpop.f32.mrb[0].mxu0
        %v469 = vadd.f32 %v429, %v468
        %v470 = vpop.f32.mrb[0].mxu0
        %471 = vmatprep.mubr.bf16.mxu0 0
        %472 = vmatmul.mubr.bf16.gmra.mrb[0].mxu0 %v405
        %v473 = vpop.f32.mrb[0].mxu0
        %v474 = vadd.f32 %v429, %v473
        %v475 = vpop.f32.mrb[0].mxu0
        %v476 = vpop.f32.mrb[0].mxu0
        %v477 = vadd.f32 %v429, %v476
        %v478 = vpop.f32.mrb[0].mxu0
        %479 = vmatprep.mubr.bf16.mxu0 0
        %480 = vmatmul.mubr.bf16.gmra.mrb[0].mxu0 %v406
        %v481 = vpop.f32.mrb[0].mxu0
        %v482 = vadd.f32 %v429, %v481
        %v483 = vpop.f32.mrb[0].mxu0
        %v484 = vpop.f32.mrb[0].mxu0
        %v485 = vadd.f32 %v429, %v484
        %v486 = vpop.f32.mrb[0].mxu0
        %487 = vmatprep.mubr.bf16.mxu0 0
        %488 = vmatmul.mubr.bf16.gmra.mrb[0].mxu0 %v407
        %v489 = vpop.f32.mrb[0].mxu0
        %v490 = vadd.f32 %v429, %v489
        %v491 = vpop.f32.mrb[0].mxu0
        %v492 = vpop.f32.mrb[0].mxu0
        %v493 = vadd.f32 %v429, %v492
        %v494 = vpop.f32.mrb[0].mxu0
        %495 = vmatprep.mubr.bf16.mxu0 0
        %496 = vmatmul.mubr.bf16.gmra.mrb[0].mxu0 %v408
        %v497 = vpop.f32.mrb[0].mxu0
        %v498 = vadd.f32 %v429, %v497
        %v499 = vpop.f32.mrb[0].mxu0
        %v500 = vpop.f32.mrb[0].mxu0
        %v501 = vadd.f32 %v429, %v500
        %v502 = vpop.f32.mrb[0].mxu0
        %503 = vmatprep.mubr.bf16.mxu0 0
        %504 = vmatmul.mubr.bf16.gmra.mrb[0].mxu0 %v409
        %v505 = vpop.f32.mrb[0].mxu0
        %v506 = vadd.f32 %v429, %v505
        %v507 = vpop.f32.mrb[0].mxu0
        %v508 = vpop.f32.mrb[0].mxu0
        %v509 = vadd.f32 %v429, %v508
        %v510 = vpop.f32.mrb[0].mxu0
        %511 = vmatprep.mubr.bf16.mxu0 0
        %512 = vmatmul.mubr.bf16.gmra.mrb[0].mxu0 %v410
        %v513 = vpop.f32.mrb[0].mxu0
        %v514 = vadd.f32 %v429, %v513
        %v515 = vpop.f32.mrb[0].mxu0
        %v516 = vpop.f32.mrb[0].mxu0
        %v517 = vadd.f32 %v429, %v516
        %v518 = vpop.f32.mrb[0].mxu0
        %519 = vmatprep.mubr.bf16.mxu0 0
        %520 = vmatmul.mubr.bf16.gmra.mrb[0].mxu0 %v411
        %v521 = vpop.f32.mrb[0].mxu0
        %v522 = vadd.f32 %v429, %v521
        %v523 = vpop.f32.mrb[0].mxu0
        %v524 = vpop.f32.mrb[0].mxu0
        %v525 = vadd.f32 %v429, %v524
        %v526 = vpop.f32.mrb[0].mxu0
        %527 = vdwg.mxu0
        %v528 = vmax.f32 %v466, 0.0
        %v529 = vmax.f32 %v469, 0.0
        %v530 = vmax.f32 %v474, 0.0
        %v531 = vmax.f32 %v477, 0.0
        %v532 = vmax.f32 %v482, 0.0
        %v533 = vmax.f32 %v485, 0.0
        %v534 = vmax.f32 %v490, 0.0
        %v535 = vmax.f32 %v493, 0.0
        %v536 = vmax.f32 %v498, 0.0
        %v537 = vmax.f32 %v501, 0.0
        %v538 = vmax.f32 %v506, 0.0
        %v539 = vmax.f32 %v509, 0.0
        %v540 = vmax.f32 %v514, 0.0
        %v541 = vmax.f32 %v517, 0.0
        %v542 = vmax.f32 %v522, 0.0
        %v543 = vmax.f32 %v525, 0.0
        %544 = vst [vmem:[%s267] sm:$0xff] %v528
        %545 = vst [vmem:[%s267 + $0x8] sm:$0xff] %v529
        %546 = vst [vmem:[%s267 + $0x10] sm:$0xff] %v530
        %547 = vst [vmem:[%s267 + $0x18] sm:$0xff] %v531
        %548 = vst [vmem:[%s267 + $0x20] sm:$0xff] %v532
        %549 = vst [vmem:[%s267 + $0x28] sm:$0xff] %v533
        %550 = vst [vmem:[%s267 + $0x30] sm:$0xff] %v534
        %551 = vst [vmem:[%s267 + $0x38] sm:$0xff] %v535
        %552 = vst [vmem:[%s267 + $0x40] sm:$0xff] %v536
        %553 = vst [vmem:[%s267 + $0x48] sm:$0xff] %v537
        %554 = vst [vmem:[%s267 + $0x50] sm:$0xff] %v538
        %555 = vst [vmem:[%s267 + $0x58] sm:$0xff] %v539
        %556 = vst [vmem:[%s267 + $0x60] sm:$0xff] %v540
        %557 = vst [vmem:[%s267 + $0x68] sm:$0xff] %v541
        %558 = vst [vmem:[%s267 + $0x70] sm:$0xff] %v542
        %559 = vst [vmem:[%s267 + $0x78] sm:$0xff] %v543
        %p560 = scmp.lt.s32.totalorder %s29, 1
        // Predicated region
        $region49: #{tpu_custom_call.1} parent=31 // pred_check
          %p561 = pneg %p560
        $region50: #{tpu_custom_call.1} parent=31 // pred_check_branch
          %563 = sbr.rel (%p561) target = $region52
        $region51: #{tpu_custom_call.1} parent=31 // pred_region
          %v564 = vpack.c.bf16 %v529, %v528
          %v565 = vpack.c.bf16 %v531, %v530
          %v566 = vpack.c.bf16 %v533, %v532
          %v567 = vpack.c.bf16 %v535, %v534
          %v568 = vpack.c.bf16 %v537, %v536
          %v569 = vpack.c.bf16 %v539, %v538
          %v570 = vpack.c.bf16 %v541, %v540
          %v571 = vpack.c.bf16 %v543, %v542
          %v572 = vld [vmem:[%s242] sm:$0xf]
          %v573 = vld [vmem:[%s242 + $0x4] sm:$0xf]
          %v574 = vld [vmem:[%s242 + $0x8] sm:$0xf]
          %v575 = vld [vmem:[%s242 + $0xc] sm:$0xf]
          %v576 = vld [vmem:[%s242 + $0x10] sm:$0xf]
          %v577 = vld [vmem:[%s242 + $0x14] sm:$0xf]
          %v578 = vld [vmem:[%s242 + $0x18] sm:$0xf]
          %v579 = vld [vmem:[%s242 + $0x1c] sm:$0xf]
          %v580 = vld [vmem:[%s242 + $0x20] sm:$0xf]
          %v581 = vld [vmem:[%s242 + $0x24] sm:$0xf]
          %v582 = vld [vmem:[%s242 + $0x28] sm:$0xf]
          %v583 = vld [vmem:[%s242 + $0x2c] sm:$0xf]
          %v584 = vld [vmem:[%s242 + $0x30] sm:$0xf]
          %v585 = vld [vmem:[%s242 + $0x34] sm:$0xf]
          %v586 = vld [vmem:[%s242 + $0x38] sm:$0xf]
          %v587 = vld [vmem:[%s242 + $0x3c] sm:$0xf]
          %v604 = vunpack.c.l.b16 %v572
          %v605 = vunpack.c.l.b16 %v573
          %v606 = vunpack.c.l.b16 %v574
          %v607 = vunpack.c.l.b16 %v575
          %v608 = vunpack.c.l.b16 %v576
          %v609 = vunpack.c.l.b16 %v577
          %v610 = vunpack.c.l.b16 %v578
          %v611 = vunpack.c.l.b16 %v579
          %v612 = vunpack.c.l.b16 %v580
          %v613 = vunpack.c.l.b16 %v581
          %v614 = vunpack.c.l.b16 %v582
          %v615 = vunpack.c.l.b16 %v583
          %v616 = vunpack.c.l.b16 %v584
          %v617 = vunpack.c.l.b16 %v585
          %v618 = vunpack.c.l.b16 %v586
          %v619 = vunpack.c.l.b16 %v587
          %v620 = vpack.c.b16 %v605, %v604
          %v621 = vpack.c.b16 %v607, %v606
          %v622 = vpack.c.b16 %v609, %v608
          %v623 = vpack.c.b16 %v611, %v610
          %v624 = vpack.c.b16 %v613, %v612
          %v625 = vpack.c.b16 %v615, %v614
          %v626 = vpack.c.b16 %v617, %v616
          %v627 = vpack.c.b16 %v619, %v618
          %636 = vmatprep.subr.bf16.mxu0 0
          %637 = vmatpush1.bf16.msra.mxu0 %v620
          %638 = vmatprep.subr.bf16.mxu0 0
          %639 = vmatpush1.bf16.msra.mxu0 %v621
          %640 = vmatprep.subr.bf16.mxu0 0
          %641 = vmatpush1.bf16.msra.mxu0 %v622
          %642 = vmatprep.subr.bf16.mxu0 0
          %643 = vmatpush1.bf16.msra.mxu0 %v623
          %644 = vmatprep.subr.bf16.mxu0 0
          %645 = vmatpush1.bf16.msra.mxu0 %v624
          %646 = vmatprep.subr.bf16.mxu0 0
          %647 = vmatpush1.bf16.msra.mxu0 %v625
          %648 = vmatprep.subr.bf16.mxu0 0
          %649 = vmatpush1.bf16.msra.mxu0 %v626
          %650 = vmatprep.subr.bf16.mxu0 0
          %651 = vmatpush1.bf16.msra.mxu0 %v627
          %652 = vmatprep.subr.bf16.mxu0 0
          %653 = vmatpush1.bf16.msra.mxu0 0
          %654 = vmatprep.subr.bf16.mxu0 0
          %655 = vmatpush1.bf16.msra.mxu0 0
          %656 = vmatprep.subr.bf16.mxu0 0
          %657 = vmatpush1.bf16.msra.mxu0 0
          %658 = vmatprep.subr.bf16.mxu0 0
          %659 = vmatpush1.bf16.msra.mxu0 0
          %660 = vmatprep.subr.bf16.mxu0 0
          %661 = vmatpush1.bf16.msra.mxu0 0
          %662 = vmatprep.subr.bf16.mxu0 0
          %663 = vmatpush1.bf16.msra.mxu0 0
          %664 = vmatprep.subr.bf16.mxu0 0
          %665 = vmatpush1.bf16.msra.mxu0 0
          %666 = vmatprep.subr.bf16.mxu0 0
          %667 = vmatpush1.bf16.msra.mxu0 0
          %668 = vmatprep.mubr.bf16.mxu0 0
          %669 = vmatmul.mubr.bf16.gmra.mrb[0].mxu0 %v564
          %v670 = vpop.f32.mrb[0].mxu0
          %v671 = vadd.f32 0.0, %v670
          %v672 = vpop.f32.mrb[0].mxu0
          %v673 = vpop.f32.mrb[0].mxu0
          %v674 = vadd.f32 0.0, %v673
          %v675 = vpop.f32.mrb[0].mxu0
          %676 = vmatprep.mubr.bf16.mxu0 0
          %677 = vmatmul.mubr.bf16.gmra.mrb[0].mxu0 %v565
          %v678 = vpop.f32.mrb[0].mxu0
          %v679 = vadd.f32 0.0, %v678
          %v680 = vpop.f32.mrb[0].mxu0
          %v681 = vpop.f32.mrb[0].mxu0
          %v682 = vadd.f32 0.0, %v681
          %v683 = vpop.f32.mrb[0].mxu0
          %684 = vmatprep.mubr.bf16.mxu0 0
          %685 = vmatmul.mubr.bf16.gmra.mrb[0].mxu0 %v566
          %v686 = vpop.f32.mrb[0].mxu0
          %v687 = vadd.f32 0.0, %v686
          %v688 = vpop.f32.mrb[0].mxu0
          %v689 = vpop.f32.mrb[0].mxu0
          %v690 = vadd.f32 0.0, %v689
          %v691 = vpop.f32.mrb[0].mxu0
          %692 = vmatprep.mubr.bf16.mxu0 0
          %693 = vmatmul.mubr.bf16.gmra.mrb[0].mxu0 %v567
          %v694 = vpop.f32.mrb[0].mxu0
          %v695 = vadd.f32 0.0, %v694
          %v696 = vpop.f32.mrb[0].mxu0
          %v697 = vpop.f32.mrb[0].mxu0
          %v698 = vadd.f32 0.0, %v697
          %v699 = vpop.f32.mrb[0].mxu0
          %700 = vmatprep.mubr.bf16.mxu0 0
          %701 = vmatmul.mubr.bf16.gmra.mrb[0].mxu0 %v568
          %v702 = vpop.f32.mrb[0].mxu0
          %v703 = vadd.f32 0.0, %v702
          %v704 = vpop.f32.mrb[0].mxu0
          %v705 = vpop.f32.mrb[0].mxu0
          %v706 = vadd.f32 0.0, %v705
          %v707 = vpop.f32.mrb[0].mxu0
          %708 = vmatprep.mubr.bf16.mxu0 0
          %709 = vmatmul.mubr.bf16.gmra.mrb[0].mxu0 %v569
          %v710 = vpop.f32.mrb[0].mxu0
          %v711 = vadd.f32 0.0, %v710
          %v712 = vpop.f32.mrb[0].mxu0
          %v713 = vpop.f32.mrb[0].mxu0
          %v714 = vadd.f32 0.0, %v713
          %v715 = vpop.f32.mrb[0].mxu0
          %716 = vmatprep.mubr.bf16.mxu0 0
          %717 = vmatmul.mubr.bf16.gmra.mrb[0].mxu0 %v570
          %v718 = vpop.f32.mrb[0].mxu0
          %v719 = vadd.f32 0.0, %v718
          %v720 = vpop.f32.mrb[0].mxu0
          %v721 = vpop.f32.mrb[0].mxu0
          %v722 = vadd.f32 0.0, %v721
          %v723 = vpop.f32.mrb[0].mxu0
          %724 = vmatprep.mubr.bf16.mxu0 0
          %725 = vmatmul.mubr.bf16.gmra.mrb[0].mxu0 %v571
          %v726 = vpop.f32.mrb[0].mxu0
          %v727 = vadd.f32 0.0, %v726
          %v728 = vpop.f32.mrb[0].mxu0
          %v729 = vpop.f32.mrb[0].mxu0
          %v730 = vadd.f32 0.0, %v729
          %v731 = vpop.f32.mrb[0].mxu0
          %732 = vdwg.mxu0
          %v733 = vpack.c.bf16 %v674, %v671
          %v734 = vpack.c.bf16 %v682, %v679
          %v735 = vpack.c.bf16 %v690, %v687
          %v736 = vpack.c.bf16 %v698, %v695
          %v737 = vpack.c.bf16 %v706, %v703
          %v738 = vpack.c.bf16 %v714, %v711
          %v739 = vpack.c.bf16 %v722, %v719
          %v740 = vpack.c.bf16 %v730, %v727
          %s741 = sadd.s32 %s399, %s372
          %s742 = sshra.s32 %s741, 4
          %s743 = sand.u32 %s741, 15
          %s744 = smul.addr %s742, 8
          %s745 = scalar_lea.vmem [#allocation2], %s744
          %746 = vst [vmem:[%s745] sm:$0xff] %v733
          %747 = vst [vmem:[%s745 + $0x8] sm:$0xff] %v734
          %748 = vst [vmem:[%s745 + $0x10] sm:$0xff] %v735
          %749 = vst [vmem:[%s745 + $0x18] sm:$0xff] %v736
          %750 = vst [vmem:[%s745 + $0x20] sm:$0xff] %v737
          %751 = vst [vmem:[%s745 + $0x28] sm:$0xff] %v738
          %752 = vst [vmem:[%s745 + $0x30] sm:$0xff] %v739
          %753 = vst [vmem:[%s745 + $0x38] sm:$0xff] %v740
        $region52: #{tpu_custom_call.1} parent=31 // pred_fallthru
          _
        %p754 = scmp.eq.s32.totalorder %s29, 1
        // Predicated region
        $region53: #{tpu_custom_call.1} parent=31 // pred_check
          %p755 = pneg %p754
        $region54: #{tpu_custom_call.1} parent=31 // pred_check_branch
          %757 = sbr.rel (%p755) target = $region56
        $region55: #{tpu_custom_call.1} parent=31 // pred_region
          %v758 = vmul.f32 %v528, %v528
          %v759 = vmul.f32 %v529, %v529
          %v760 = vmul.f32 %v530, %v530
          %v761 = vmul.f32 %v531, %v531
          %v762 = vmul.f32 %v532, %v532
          %v763 = vmul.f32 %v533, %v533
          %v764 = vmul.f32 %v534, %v534
          %v765 = vmul.f32 %v535, %v535
          %v766 = vmul.f32 %v536, %v536
          %v767 = vmul.f32 %v537, %v537
          %v768 = vmul.f32 %v538, %v538
          %v769 = vmul.f32 %v539, %v539
          %v770 = vmul.f32 %v540, %v540
          %v771 = vmul.f32 %v541, %v541
          %v772 = vmul.f32 %v542, %v542
          %v773 = vmul.f32 %v543, %v543
          %774 = vadd.xlane.f32.xlu0 %v758
          %v775 = vpop.xlane.xlu0 %774
          %776 = vadd.xlane.f32.xlu0 %v759
          %v777 = vpop.xlane.xlu0 %776
          %778 = vadd.xlane.f32.xlu0 %v760
          %v779 = vpop.xlane.xlu0 %778
          %780 = vadd.xlane.f32.xlu0 %v761
          %v781 = vpop.xlane.xlu0 %780
          %782 = vadd.xlane.f32.xlu0 %v762
          %v783 = vpop.xlane.xlu0 %782
          %784 = vadd.xlane.f32.xlu0 %v763
          %v785 = vpop.xlane.xlu0 %784
          %786 = vadd.xlane.f32.xlu0 %v764
          %v787 = vpop.xlane.xlu0 %786
          %788 = vadd.xlane.f32.xlu0 %v765
          %v789 = vpop.xlane.xlu0 %788
          %790 = vadd.xlane.f32.xlu0 %v766
          %v791 = vpop.xlane.xlu0 %790
          %792 = vadd.xlane.f32.xlu0 %v767
          %v793 = vpop.xlane.xlu0 %792
          %794 = vadd.xlane.f32.xlu0 %v768
          %v795 = vpop.xlane.xlu0 %794
          %796 = vadd.xlane.f32.xlu0 %v769
          %v797 = vpop.xlane.xlu0 %796
          %798 = vadd.xlane.f32.xlu0 %v770
          %v799 = vpop.xlane.xlu0 %798
          %800 = vadd.xlane.f32.xlu0 %v771
          %v801 = vpop.xlane.xlu0 %800
          %802 = vadd.xlane.f32.xlu0 %v772
          %v803 = vpop.xlane.xlu0 %802
          %804 = vadd.xlane.f32.xlu0 %v773
          %v805 = vpop.xlane.xlu0 %804
          %v806 = vmax.f32 %v775, 1e-24
          %v807 = vmax.f32 %v777, 1e-24
          %v808 = vmax.f32 %v779, 1e-24
          %v809 = vmax.f32 %v781, 1e-24
          %v810 = vmax.f32 %v783, 1e-24
          %v811 = vmax.f32 %v785, 1e-24
          %v812 = vmax.f32 %v787, 1e-24
          %v813 = vmax.f32 %v789, 1e-24
          %v814 = vmax.f32 %v791, 1e-24
          %v815 = vmax.f32 %v793, 1e-24
          %v816 = vmax.f32 %v795, 1e-24
          %v817 = vmax.f32 %v797, 1e-24
          %v818 = vmax.f32 %v799, 1e-24
          %v819 = vmax.f32 %v801, 1e-24
          %v820 = vmax.f32 %v803, 1e-24
          %v821 = vmax.f32 %v805, 1e-24
          %v822 = vrsqrt.pop %v806
          %v823 = vrsqrt.pop %v807
          %v824 = vrsqrt.pop %v808
          %v825 = vrsqrt.pop %v809
          %v826 = vrsqrt.pop %v810
          %v827 = vrsqrt.pop %v811
          %v828 = vrsqrt.pop %v812
          %v829 = vrsqrt.pop %v813
          %v830 = vrsqrt.pop %v814
          %v831 = vrsqrt.pop %v815
          %v832 = vrsqrt.pop %v816
          %v833 = vrsqrt.pop %v817
          %v834 = vrsqrt.pop %v818
          %v835 = vrsqrt.pop %v819
          %v836 = vrsqrt.pop %v820
          %v837 = vrsqrt.pop %v821
          %v838 = vmul.f32 %v528, %v822
          %v839 = vmul.f32 %v529, %v823
          %v840 = vmul.f32 %v530, %v824
          %v841 = vmul.f32 %v531, %v825
          %v842 = vmul.f32 %v532, %v826
          %v843 = vmul.f32 %v533, %v827
          %v844 = vmul.f32 %v534, %v828
          %v845 = vmul.f32 %v535, %v829
          %v846 = vmul.f32 %v536, %v830
          %v847 = vmul.f32 %v537, %v831
          %v848 = vmul.f32 %v538, %v832
          %v849 = vmul.f32 %v539, %v833
          %v850 = vmul.f32 %v540, %v834
          %v851 = vmul.f32 %v541, %v835
          %v852 = vmul.f32 %v542, %v836
          %v853 = vmul.f32 %v543, %v837
          %854 = vst [vmem:[#allocation11] sm:$0xff] %v838
          %855 = vst [vmem:[#allocation11 + $0x8] sm:$0xff] %v839
          %856 = vst [vmem:[#allocation11 + $0x10] sm:$0xff] %v840
          %857 = vst [vmem:[#allocation11 + $0x18] sm:$0xff] %v841
          %858 = vst [vmem:[#allocation11 + $0x20] sm:$0xff] %v842
          %859 = vst [vmem:[#allocation11 + $0x28] sm:$0xff] %v843
          %860 = vst [vmem:[#allocation11 + $0x30] sm:$0xff] %v844
          %861 = vst [vmem:[#allocation11 + $0x38] sm:$0xff] %v845
          %862 = vst [vmem:[#allocation11 + $0x40] sm:$0xff] %v846
          %863 = vst [vmem:[#allocation11 + $0x48] sm:$0xff] %v847
          %864 = vst [vmem:[#allocation11 + $0x50] sm:$0xff] %v848
          %865 = vst [vmem:[#allocation11 + $0x58] sm:$0xff] %v849
          %866 = vst [vmem:[#allocation11 + $0x60] sm:$0xff] %v850
          %867 = vst [vmem:[#allocation11 + $0x68] sm:$0xff] %v851
          %868 = vst [vmem:[#allocation11 + $0x70] sm:$0xff] %v852
          %869 = vst [vmem:[#allocation11 + $0x78] sm:$0xff] %v853
        $region56: #{tpu_custom_call.1} parent=31 // pred_fallthru
          _
        %s870 = sand.u32 %s126, 1
        %s871 = scalar_lea.sflag [#allocation7], %s870
        %s872 = sand.u32 %s126, 1
        %s873 = smul.addr %s872, 128
        %s874 = scalar_lea.vmem [#allocation10], %s873
        // Predicated region
        $region57: #{tpu_custom_call.1} parent=31 // pred_check
          %p875 = pneg %p136
        $region58: #{tpu_custom_call.1} parent=31 // pred_check_branch
          %877 = sbr.rel (%p875) target = $region60
        $region59: #{tpu_custom_call.1} parent=31 // pred_region
          %s878 = smul.u32 16, %s30
          %s880 = ssub.s32 2048, 2048
          %881 = vsyncadd %s871, %s880
          %s882 = smul.addr %s29, 16
          %s883 = sadd.s32 %s878, %s882
          %s884 = smul.addr %s883, 128
          %s885 = scalar_lea.hbm %s4, %s884
          %s886 = sshll.u32 %s874, 4
          %s887 = int_to_ptr.vmem [resolvable:$true] %s886
          %892 = dma.vmem_to_hbm [thread:$0]  %s887, 2048, %s885, %s871, 128, 128, 8
        $region60: #{tpu_custom_call.1} parent=31 // pred_fallthru
          _
        // Predicated region
        $region61: #{tpu_custom_call.1} parent=31 // pred_check
          %p893 = pneg %p162
        $region62: #{tpu_custom_call.1} parent=31 // pred_check_branch
          %895 = sbr.rel (%p893) target = $region64
        $region63: #{tpu_custom_call.1} parent=31 // pred_region
          %s896 = smul.u32 16, %s30
          %s898 = ssub.s32 2048, 2048
          %899 = vsyncadd [#allocation12], %s898
          %s900 = smul.addr %s896, 128
          %s901 = scalar_lea.hbm %s5, %s900
          %s902 = sshll.u32 [#allocation11], 4
          %s903 = int_to_ptr.vmem [resolvable:$true] %s902
          %908 = dma.vmem_to_hbm [thread:$0]  %s903, 2048, %s901, [#allocation12], 128, 128, 8
        $region64: #{tpu_custom_call.1} parent=31 // pred_fallthru
          _
        // Predicated region
        $region65: #{tpu_custom_call.1} parent=31 // pred_check
          %p909 = pneg %p162
        $region66: #{tpu_custom_call.1} parent=31 // pred_check_branch
          %911 = sbr.rel (%p909) target = $region68
        $region67: #{tpu_custom_call.1} parent=31 // pred_region
          %912 = dma.done [#allocation12], 2048
        $region68: #{tpu_custom_call.1} parent=31 // pred_fallthru
          _
      $region32: #{tpu_custom_call.1} parent=5 // pred_fallthru
        _
      %p913 = scmp.le.s32.totalorder 2, %s20
      // Predicated region
      $region69: #{tpu_custom_call.1} parent=5 // pred_check
        %p914 = pneg %p913
      $region70: #{tpu_custom_call.1} parent=5 // pred_check_branch
        %916 = sbr.rel (%p914) target = $region72
      $region71: #{tpu_custom_call.1} parent=5 // pred_region
        %s917 = ssub.s32 %s20, 2
        // Predicated region
        $region73: #{tpu_custom_call.1} parent=71 // pred_check
          %p918 = pneg %p142
        $region74: #{tpu_custom_call.1} parent=71 // pred_check_branch
          %920 = sbr.rel (%p918) target = $region76
        $region75: #{tpu_custom_call.1} parent=71 // pred_region
          %s921 = sand.u32 %s127, 1
          %s922 = scalar_lea.sflag [#allocation7], %s921
          %s923 = sand.u32 %s127, 1
          %s924 = smul.addr %s923, 128
          %s925 = scalar_lea.vmem [#allocation10], %s924
          %926 = dma.done %s922, 2048
        $region76: #{tpu_custom_call.1} parent=71 // pred_fallthru
          _
      $region72: #{tpu_custom_call.1} parent=5 // pred_fallthru
        _
    $region6: #{tpu_custom_call.1} parent=1 // loop_footer
      %s24 = sadd.s32 1, %s20
    $region7: #{tpu_custom_call.1} parent=1 // loop_footer_branch
      %19 = sbr.rel target = $region3
    $region8: #{tpu_custom_call.1} parent=1 // loop_exit
      _
    %927 = vsyncpa [#allocation6], 1
    %s928 = scalar_lea.sflag [#allocation6], 1
    %929 = vsyncpa %s928, 1
    %930 = vsyncpa [#allocation9], 1
    %s931 = scalar_lea.sflag [#allocation9], 1
    %932 = vsyncpa %s931, 1
    %933 = vsyncpa [#allocation7], 1
    %s934 = scalar_lea.sflag [#allocation7], 1
    %935 = vsyncpa %s934, 1
    %936 = vsyncpa [#allocation12], 1
  %937 = vsyncmov [#allocation4]
  %s938 = vpop.sfrf %937
  %p939 = scmp.eq.s32.totalorder %s938, 0
  %p940 = pneg %p939
  %942 = shalt.err (%p940)

</llo_original>
